<compile_context>
chip_gen: v6e
topology: v6e:2x2x1
jax: 0.10.0
libtpu: 0.0.40
codegen_flags: <defaults>
</compile_context>

<pallas_src>
import jax
import jax.numpy as jnp
from jax.experimental import pallas as pl
from jax.experimental.pallas import tpu as pltpu


def _round_up(x, m):
    return ((x + m - 1) // m) * m


# ---------------------------------------------------------------------------
# Kernel: grid = (batch_tiles [parallel], hidden_tiles [arbitrary])
# ---------------------------------------------------------------------------
def _mlp_kernel(x_ref, w1t_ref, b1_ref, w2t_ref, b2_ref, o_ref, acc_ref):
    # x:    [TM, I_pad]                (per batch tile, constant over h)
    # w1t:  [I_pad, TH]   b1: [1, TH]  (per hidden tile)
    # w2t:  [TH, O_pad]   b2: [1, O_pad]
    # o:    [TM, O_pad]   acc (scratch): [TM, O_pad] f32
    hi = pl.program_id(1)

    @pl.when(hi == 0)
    def _init():
        acc_ref[...] = jnp.zeros_like(acc_ref)

    # First layer chunk + bias + ReLU, epilogue in f32.  astype is a no-op for
    # f32 params; for bf16 params it feeds the MXU with bf16 operands only.
    x = x_ref[...].astype(w1t_ref.dtype)
    h0 = jnp.dot(x, w1t_ref[...], preferred_element_type=jnp.float32)
    h0 = jnp.maximum(h0 + b1_ref[...].astype(jnp.float32), 0.0)

    # Second layer chunk accumulated into the f32 scratch.
    acc_ref[...] += jnp.dot(h0.astype(w2t_ref.dtype), w2t_ref[...],
                            preferred_element_type=jnp.float32)

    @pl.when(hi == pl.num_programs(1) - 1)
    def _finalize():
        o_ref[...] = (acc_ref[...] + b2_ref[...].astype(jnp.float32)).astype(o_ref.dtype)


# ---------------------------------------------------------------------------
# One-time parameter preparation (hoisted out of the per-call path).
# ---------------------------------------------------------------------------
def prepare_net_params(w1, b1, w2, b2, *, param_dtype=None):
    """Pad to lane multiples and pre-transpose nn.Linear params ONCE.

    w1: [hidden, input], b1: [hidden]   (PyTorch nn.Linear layout)
    w2: [output, hidden], b2: [output]
    param_dtype=None keeps the original weight dtype (exact vs. the f32
    reference); pass jnp.bfloat16 to trade a little accuracy for MXU speed
    and halved weight HBM/VMEM traffic.
    """
    if param_dtype is None:
        param_dtype = w1.dtype
    hidden_size, input_size = w1.shape
    output_size = w2.shape[0]

    i_pad = _round_up(input_size, 128)
    h_pad = _round_up(hidden_size, 128)
    o_pad = _round_up(output_size, 128)

    w1t = (jnp.zeros((i_pad, h_pad), param_dtype)
           .at[:input_size, :hidden_size].set(w1.T.astype(param_dtype)))
    w2t = (jnp.zeros((h_pad, o_pad), param_dtype)
           .at[:hidden_size, :output_size].set(w2.T.astype(param_dtype)))
    b1p = jnp.zeros((1, h_pad), param_dtype).at[0, :hidden_size].set(b1.astype(param_dtype))
    b2p = jnp.zeros((1, o_pad), param_dtype).at[0, :output_size].set(b2.astype(param_dtype))

    return {
        "w1t": w1t, "b1": b1p, "w2t": w2t, "b2": b2p,
        "input_size": input_size, "hidden_size": hidden_size,
        "output_size": output_size,
    }


def _vmem_bytes(tm, i_pad, th, o_pad, act_bytes, par_bytes):
    """Double-buffered in/out tiles + f32 accumulator scratch."""
    dbl = 2
    return (dbl * tm * i_pad * act_bytes        # x tile
            + dbl * i_pad * th * par_bytes      # w1t tile
            + dbl * th * par_bytes              # b1 tile
            + dbl * th * o_pad * par_bytes      # w2t tile
            + dbl * o_pad * par_bytes           # b2 tile
            + dbl * tm * o_pad * act_bytes      # out tile
            + tm * o_pad * 4)                   # f32 accumulator


def _pick_hidden_tile(h_pad, cap):
    """Largest multiple of 128 that divides h_pad and is <= cap."""
    n = h_pad // 128
    best = 128
    for k in range(1, n + 1):
        if n % k == 0 and 128 * k <= cap:
            best = 128 * k
    return best


# ---------------------------------------------------------------------------
# Forward pass.
# ---------------------------------------------------------------------------
def net_forward(x, params, *, batch_tile=256, hidden_tile=512):
    """x: [batch, input_size]; params from prepare_net_params."""
    w1t, b1p, w2t, b2p = params["w1t"], params["b1"], params["w2t"], params["b2"]
    input_size = params["input_size"]
    hidden_size = params["hidden_size"]
    output_size = params["output_size"]

    batch = x.shape[0]
    dtype = x.dtype
    i_pad, h_pad = w1t.shape
    o_pad = w2t.shape[1]

    act_bytes = jnp.dtype(dtype).itemsize
    par_bytes = jnp.dtype(w1t.dtype).itemsize

    # dtype-aware sublane rounding (f32 -> 8, bf16 -> 16, int8/fp8 -> 32).
    sub = {4: 8, 2: 16, 1: 32}.get(act_bytes, 8)

    # Minimal batch padding: pad batch only to the sublane multiple; grid uses
    # cdiv so a partial last block wastes at most (sub-1) real rows.
    b_pad = _round_up(batch, sub)
    tm = min(_round_up(batch_tile, sub), b_pad)

    # Hidden tile: multiple of 128 that divides h_pad, shrunk (then tm) until
    # the footprint fits a conservative, v7x-safe VMEM budget.
    budget = 32 * 1024 * 1024
    th = _pick_hidden_tile(h_pad, hidden_tile)
    while _vmem_bytes(tm, i_pad, th, o_pad, act_bytes, par_bytes) > budget and th > 128:
        th = _pick_hidden_tile(h_pad, th - 128)
    while _vmem_bytes(tm, i_pad, th, o_pad, act_bytes, par_bytes) > budget and tm > sub:
        tm = max(sub, _round_up(tm // 2, sub))

    footprint = _vmem_bytes(tm, i_pad, th, o_pad, act_bytes, par_bytes)
    vmem_limit = min(96 << 20, max(int(footprint * 1.5) + (2 << 20), 32 << 20))

    # Pad x only when required (skip the copy for already-aligned shapes).
    if b_pad == batch and i_pad == input_size:
        xp = x
    else:
        xp = jnp.zeros((b_pad, i_pad), dtype).at[:batch, :input_size].set(x)

    grid_m = pl.cdiv(b_pad, tm)
    grid_h = h_pad // th
    grid = (grid_m, grid_h)

    cost = pl.CostEstimate(
        flops=2 * b_pad * (i_pad * h_pad + h_pad * o_pad),
        transcendentals=0,
        bytes_accessed=(b_pad * i_pad + b_pad * o_pad) * act_bytes
        + (i_pad * h_pad + h_pad + h_pad * o_pad + o_pad) * par_bytes,
    )

    out_padded = pl.pallas_call(
        _mlp_kernel,
        out_shape=jax.ShapeDtypeStruct((b_pad, o_pad), dtype),
        grid_spec=pltpu.PrefetchScalarGridSpec(
            num_scalar_prefetch=0,
            grid=grid,
            in_specs=[
                # Activations: batch-tiled, constant over the hidden axis.
                pl.BlockSpec((tm, i_pad), lambda i, h: (i, 0)),
                # W1^T / b1: stream along the hidden axis.
                pl.BlockSpec((i_pad, th), lambda i, h: (0, h)),
                pl.BlockSpec((1, th), lambda i, h: (0, h)),
                # W2^T: stream along the hidden axis.
                pl.BlockSpec((th, o_pad), lambda i, h: (h, 0)),
                # b2: constant.
                pl.BlockSpec((1, o_pad), lambda i, h: (0, 0)),
            ],
            out_specs=pl.BlockSpec((tm, o_pad), lambda i, h: (i, 0)),
            scratch_shapes=[pltpu.VMEM((tm, o_pad), jnp.float32)],
        ),
        compiler_params=pltpu.CompilerParams(
            dimension_semantics=("parallel", "arbitrary"),
            vmem_limit_bytes=vmem_limit,
        ),
        cost_estimate=cost,
    )(xp, w1t, b1p, w2t, b2p)

    # Strip padding back to the logical shape.
    return out_padded[:batch, :output_size]


if __name__ == "__main__":
    # Small, module-consistent shapes.
    batch = 8
    input_size = 32
    hidden_size = 64
    output_size = 16

    key = jax.random.PRNGKey(0)
    kx, k1, k2, k3, k4 = jax.random.split(key, 5)

    x = jax.random.normal(kx, (batch, input_size), dtype=jnp.float32)

    # PyTorch nn.Linear parameter shapes: W [out, in], b [out].
    bound1 = 1.0 / (input_size ** 0.5)
    w1 = jax.random.uniform(k1, (hidden_size, input_size), jnp.float32, -bound1, bound1)
    b1 = jax.random.uniform(k2, (hidden_size,), jnp.float32, -bound1, bound1)

    bound2 = 1.0 / (hidden_size ** 0.5)
    w2 = jax.random.uniform(k3, (output_size, hidden_size), jnp.float32, -bound2, bound2)
    b2 = jax.random.uniform(k4, (output_size,), jnp.float32, -bound2, bound2)

    # Parameter prep done ONCE (hoisted out of the per-call path).
    params = prepare_net_params(w1, b1, w2, b2)

    out = net_forward(x, params)
    jax.block_until_ready(out)

    # Reference check in plain JAX.
    ref = jnp.maximum(x @ w1.T + b1, 0.0) @ w2.T + b2
    assert out.shape == (batch, output_size)
    assert jnp.allclose(out, ref, atol=1e-5, rtol=1e-5)

    print("KERNEL_OK")
</pallas_src>

<mosaic_0001>
module attributes {stable_mosaic.version = 11 : i64} {
  func.func @_mlp_kernel(%arg0: i32, %arg1: i32, %arg2: memref<8x128xf32, #tpu.memory_space<vmem>>, %arg3: memref<128x128xf32, #tpu.memory_space<vmem>>, %arg4: memref<1x128xf32, #tpu.memory_space<vmem>>, %arg5: memref<128x128xf32, #tpu.memory_space<vmem>>, %arg6: memref<1x128xf32, #tpu.memory_space<vmem>>, %arg7: memref<8x128xf32, #tpu.memory_space<vmem>>, %arg8: memref<8x128xf32, #tpu.memory_space<vmem>>) attributes {dimension_semantics = [#tpu.dimension_semantics<parallel>, #tpu.dimension_semantics<arbitrary>], iteration_bounds = array<i64: 1, 1>, scalar_prefetch = 0 : i64, scratch_operands = 1 : i64, tpu.core_type = #tpu.core_type<tc>, window_params = [{transform_indices = @transform_0, window_bounds = array<i64: 8, 128>}, {transform_indices = @transform_1, window_bounds = array<i64: 128, 128>}, {transform_indices = @transform_2, window_bounds = array<i64: 1, 128>}, {transform_indices = @transform_3, window_bounds = array<i64: 128, 128>}, {pipeline_mode = #tpu.pipeline_mode<synchronous>, transform_indices = @transform_4, window_bounds = array<i64: 1, 128>}, {transform_indices = @transform_5, window_bounds = array<i64: 8, 128>}]} {
    %c0_i32 = arith.constant 0 : i32
    %0 = arith.cmpi eq, %arg1, %c0_i32 : i32
    %1 = arith.extui %0 : i1 to i32
    %c0_i32_0 = arith.constant 0 : i32
    %2 = arith.cmpi ne, %1, %c0_i32_0 : i32
    scf.if %2 {
      %cst_16 = arith.constant 0.000000e+00 : f32
      %19 = vector.broadcast %cst_16 : f32 to vector<8x128xf32>
      %c0_17 = arith.constant 0 : index
      %c0_18 = arith.constant 0 : index
      %20 = vector.load %arg8[%c0_17, %c0_18] : memref<8x128xf32, #tpu.memory_space<vmem>>, vector<8x128xf32>
      tpu.vector_store %arg8[%c0_17, %c0_18], %19 {strides = array<i32>} : memref<8x128xf32, #tpu.memory_space<vmem>>, vector<8x128xf32>,
    } else {
    }
    %c0 = arith.constant 0 : index
    %c0_1 = arith.constant 0 : index
    %3 = vector.load %arg2[%c0, %c0_1] : memref<8x128xf32, #tpu.memory_space<vmem>>, vector<8x128xf32>
    %c0_2 = arith.constant 0 : index
    %c0_3 = arith.constant 0 : index
    %4 = vector.load %arg3[%c0_2, %c0_3] : memref<128x128xf32, #tpu.memory_space<vmem>>, vector<128x128xf32>
    %cst = arith.constant dense<0.000000e+00> : vector<8x128xf32>
    %5 = tpu.matmul %3, %4, %cst {dimension_numbers = #tpu.dot_dimension_numbers<[1], [0], [0], [1], [0, 0, 1, 1], [], []>} : vector<8x128xf32>, vector<128x128xf32>, vector<8x128xf32> -> vector<8x128xf32>
    %c0_4 = arith.constant 0 : index
    %c0_5 = arith.constant 0 : index
    %6 = vector.load %arg4[%c0_4, %c0_5] : memref<1x128xf32, #tpu.memory_space<vmem>>, vector<1x128xf32>
    %7 = vector.broadcast %6 : vector<1x128xf32> to vector<8x128xf32>
    %8 = arith.addf %5, %7 : vector<8x128xf32>
    %cst_6 = arith.constant 0.000000e+00 : f32
    %9 = vector.broadcast %cst_6 : f32 to vector<8x128xf32>
    %10 = arith.maximumf %8, %9 : vector<8x128xf32>
    %c0_7 = arith.constant 0 : index
    %c0_8 = arith.constant 0 : index
    %11 = vector.load %arg8[%c0_7, %c0_8] : memref<8x128xf32, #tpu.memory_space<vmem>>, vector<8x128xf32>
    %c0_9 = arith.constant 0 : index
    %c0_10 = arith.constant 0 : index
    %12 = vector.load %arg5[%c0_9, %c0_10] : memref<128x128xf32, #tpu.memory_space<vmem>>, vector<128x128xf32>
    %cst_11 = arith.constant dense<0.000000e+00> : vector<8x128xf32>
    %13 = tpu.matmul %10, %12, %cst_11 {dimension_numbers = #tpu.dot_dimension_numbers<[1], [0], [0], [1], [0, 0, 1, 1], [], []>} : vector<8x128xf32>, vector<128x128xf32>, vector<8x128xf32> -> vector<8x128xf32>
    %14 = arith.addf %11, %13 : vector<8x128xf32>
    %c0_12 = arith.constant 0 : index
    %c0_13 = arith.constant 0 : index
    %15 = vector.load %arg8[%c0_12, %c0_13] : memref<8x128xf32, #tpu.memory_space<vmem>>, vector<8x128xf32>
    tpu.vector_store %arg8[%c0_12, %c0_13], %14 {strides = array<i32>} : memref<8x128xf32, #tpu.memory_space<vmem>>, vector<8x128xf32>,
    %c0_i32_14 = arith.constant 0 : i32
    %16 = arith.cmpi eq, %arg1, %c0_i32_14 : i32
    %17 = arith.extui %16 : i1 to i32
    %c0_i32_15 = arith.constant 0 : i32
    %18 = arith.cmpi ne, %17, %c0_i32_15 : i32
    scf.if %18 {
      %c0_16 = arith.constant 0 : index
      %c0_17 = arith.constant 0 : index
      %19 = vector.load %arg8[%c0_16, %c0_17] : memref<8x128xf32, #tpu.memory_space<vmem>>, vector<8x128xf32>
      %c0_18 = arith.constant 0 : index
      %c0_19 = arith.constant 0 : index
      %20 = vector.load %arg6[%c0_18, %c0_19] : memref<1x128xf32, #tpu.memory_space<vmem>>, vector<1x128xf32>
      %21 = vector.broadcast %20 : vector<1x128xf32> to vector<8x128xf32>
      %22 = arith.addf %19, %21 : vector<8x128xf32>
      %c0_20 = arith.constant 0 : index
      %c0_21 = arith.constant 0 : index
      %23 = vector.load %arg7[%c0_20, %c0_21] : memref<8x128xf32, #tpu.memory_space<vmem>>, vector<8x128xf32>
      tpu.vector_store %arg7[%c0_20, %c0_21], %22 {strides = array<i32>} : memref<8x128xf32, #tpu.memory_space<vmem>>, vector<8x128xf32>,
    } else {
    }
    return
  }
  func.func @transform_0(%arg0: i32, %arg1: i32) -> (i32, i32) {
    %c0_i32 = arith.constant 0 : i32
    %c0_i32_0 = arith.constant 0 : i32
    return %arg0, %c0_i32 : i32, i32
  }
  func.func @transform_1(%arg0: i32, %arg1: i32) -> (i32, i32) {
    %c0_i32 = arith.constant 0 : i32
    %c0_i32_0 = arith.constant 0 : i32
    return %c0_i32, %arg1 : i32, i32
  }
  func.func @transform_2(%arg0: i32, %arg1: i32) -> (i32, i32) {
    %c0_i32 = arith.constant 0 : i32
    %c0_i32_0 = arith.constant 0 : i32
    return %c0_i32, %arg1 : i32, i32
  }
  func.func @transform_3(%arg0: i32, %arg1: i32) -> (i32, i32) {
    %c0_i32 = arith.constant 0 : i32
    %c0_i32_0 = arith.constant 0 : i32
    return %arg1, %c0_i32 : i32, i32
  }
  func.func @transform_4(%arg0: i32, %arg1: i32) -> (i32, i32) {
    %c0_i32 = arith.constant 0 : i32
    %c0_i32_0 = arith.constant 0 : i32
    %c0_i32_1 = arith.constant 0 : i32
    return %c0_i32, %c0_i32_0 : i32, i32
  }
  func.func @transform_5(%arg0: i32, %arg1: i32) -> (i32, i32) {
    %c0_i32 = arith.constant 0 : i32
    %c0_i32_0 = arith.constant 0 : i32
    return %arg0, %c0_i32 : i32, i32
  }
}

</mosaic_0001>

<llo_original>
// kernel: tpu_custom_call.1
$region0: #{tpu_custom_call.1}
  #allocation0 [shape = 'u32[]', space=smem, size = 0x4, offset = 0x4, fixed_abs, tag = 'smem constant byte address 0x4 - core index']
  #allocation1 [shape = 'u32[144,128]{1,0:T(1,128)}', space=vmem, size = 0x12000, scoped, tag = 'internal scratch']
  #allocation2 [shape = 'f32[8,128]{1,0:T(8,128)}', space=vmem, size = 0x1000, scoped, tag = 'scratch operand']
  %s0 = inlined_call_operand.hbm [shape: f32[8,128], index: 0, kind: input, shape index: {}]
  %s1 = inlined_call_operand.hbm [shape: f32[128,128], index: 1, kind: input, shape index: {}]
  %s2 = inlined_call_operand.vmem [shape: f32[1,128], index: 2, kind: input, shape index: {}]
  %s3 = inlined_call_operand.hbm [shape: f32[128,128], index: 3, kind: input, shape index: {}]
  %s4 = inlined_call_operand.vmem [shape: f32[1,128], index: 4, kind: input, shape index: {}]
  %s5 = inlined_call_operand.hbm [shape: f32[8,128], index: 5, kind: output, shape index: {}]
  %s6 = sld [smem:[#allocation0]]
  $region50: #{tpu_custom_call.1} parent=0
    _
  %s8 = ssub.s32 1, %s6
  %s9 = scalar_select 0, %s8, %s6
  $region1: #{tpu_custom_call.1} parent=0
    #allocation3 [shape = 'u8[4096]{0}', space=vmem, size = 0x1000, scoped, tag = 'input window, operand 0, single buffered']
    #allocation4 [shape = 's32[1]{0}', space=sflag, size = 0x4, scoped, tag = 'scoped memory for tpu_custom_call.1']
    #allocation5 [shape = 's32[1]{0}', space=sflag, size = 0x4, scoped, tag = 'scoped memory for tpu_custom_call.1']
    #allocation6 [shape = 'u8[65536]{0}', space=vmem, size = 0x10000, scoped, tag = 'input window, operand 1, single buffered']
    #allocation7 [shape = 's32[1]{0}', space=sflag, size = 0x4, scoped, tag = 'scoped memory for tpu_custom_call.1']
    #allocation8 [shape = 'u8[65536]{0}', space=vmem, size = 0x10000, scoped, tag = 'input window, operand 3, single buffered']
    #allocation9 [shape = 'u8[4096]{0}', space=vmem, size = 0x1000, scoped, tag = 'output window, operand 0, single buffered']
    %10 = vsyncpa [#allocation4], 0
    %11 = vsyncpa [#allocation7], 0
    %12 = vsyncpa [#allocation5], 0
    // Predicated region
    $region2: #{tpu_custom_call.1} parent=1 // pred_check
      _
    $region3: #{tpu_custom_call.1} parent=1 // pred_check_branch
      %14 = sbr.rel (0) target = $region5
    $region4: #{tpu_custom_call.1} parent=1 // pred_region
      %s16 = ssub.s32 128, 128
      %17 = vsyncadd [#allocation4], %s16
      %s19 = sshll.u32 [#allocation3], 4
      %s20 = int_to_ptr.vmem [resolvable:$true] %s19
      %22 = dma.hbm_to_vmem [thread:$0]  %s0, 128, %s20, [#allocation4]
    $region5: #{tpu_custom_call.1} parent=1 // pred_fallthru
      _
    // Predicated region
    $region6: #{tpu_custom_call.1} parent=1 // pred_check
      _
    $region7: #{tpu_custom_call.1} parent=1 // pred_check_branch
      %24 = sbr.rel (0) target = $region9
    $region8: #{tpu_custom_call.1} parent=1 // pred_region
      %s26 = ssub.s32 2048, 2048
      %27 = vsyncadd [#allocation7], %s26
      %s28 = sshll.u32 [#allocation6], 4
      %s29 = int_to_ptr.vmem [resolvable:$true] %s28
      %34 = dma.hbm_to_vmem [thread:$0]  %s1, 2048, %s29, [#allocation7], 128, 128, 8
    $region9: #{tpu_custom_call.1} parent=1 // pred_fallthru
      _
    // Predicated region
    $region10: #{tpu_custom_call.1} parent=1 // pred_check
      _
    $region11: #{tpu_custom_call.1} parent=1 // pred_check_branch
      %36 = sbr.rel (0) target = $region13
    $region12: #{tpu_custom_call.1} parent=1 // pred_region
      _
    $region13: #{tpu_custom_call.1} parent=1 // pred_fallthru
      _
    // Predicated region
    $region14: #{tpu_custom_call.1} parent=1 // pred_check
      _
    $region15: #{tpu_custom_call.1} parent=1 // pred_check_branch
      %38 = sbr.rel (0) target = $region17
    $region16: #{tpu_custom_call.1} parent=1 // pred_region
      %s40 = ssub.s32 2048, 2048
      %41 = vsyncadd [#allocation7], %s40
      %s42 = sshll.u32 [#allocation8], 4
      %s43 = int_to_ptr.vmem [resolvable:$true] %s42
      %48 = dma.hbm_to_vmem [thread:$0]  %s3, 2048, %s43, [#allocation7], 128, 128, 8
    $region17: #{tpu_custom_call.1} parent=1 // pred_fallthru
      _
    // Predicated region
    $region18: #{tpu_custom_call.1} parent=1 // pred_check
      _
    $region19: #{tpu_custom_call.1} parent=1 // pred_check_branch
      %50 = sbr.rel (0) target = $region21
    $region20: #{tpu_custom_call.1} parent=1 // pred_region
      _
    $region21: #{tpu_custom_call.1} parent=1 // pred_fallthru
      _
    // Predicated region
    $region22: #{tpu_custom_call.1} parent=1 // pred_check
      _
    $region23: #{tpu_custom_call.1} parent=1 // pred_check_branch
      %52 = sbr.rel (0) target = $region25
    $region24: #{tpu_custom_call.1} parent=1 // pred_region
      %53 = dma.done [#allocation4], 128
    $region25: #{tpu_custom_call.1} parent=1 // pred_fallthru
      _
    // Predicated region
    $region26: #{tpu_custom_call.1} parent=1 // pred_check
      _
    $region27: #{tpu_custom_call.1} parent=1 // pred_check_branch
      %55 = sbr.rel (0) target = $region29
    $region28: #{tpu_custom_call.1} parent=1 // pred_region
      %56 = dma.done [#allocation7], 2048
    $region29: #{tpu_custom_call.1} parent=1 // pred_fallthru
      _
    // Predicated region
    $region30: #{tpu_custom_call.1} parent=1 // pred_check
      _
    $region31: #{tpu_custom_call.1} parent=1 // pred_check_branch
      %58 = sbr.rel (0) target = $region33
    $region32: #{tpu_custom_call.1} parent=1 // pred_region
      %59 = dma.done [#allocation7], 2048
    $region33: #{tpu_custom_call.1} parent=1 // pred_fallthru
      _
    %p60 = scmp.eq.s32.totalorder 0, 0
    // Predicated region
    $region34: #{tpu_custom_call.1} parent=1 // pred_check
      %p61 = pneg %p60
    $region35: #{tpu_custom_call.1} parent=1 // pred_check_branch
      %63 = sbr.rel (%p61) target = $region37
    $region36: #{tpu_custom_call.1} parent=1 // pred_region
      %64 = vst [vmem:[#allocation2] sm:$0xff] 0.0
    $region37: #{tpu_custom_call.1} parent=1 // pred_fallthru
      _
    %v65 = vld [vmem:[#allocation3] sm:$0xff]
    %v66 = vld [vmem:[#allocation6] sm:$0xff]
    %v67 = vld [vmem:[#allocation6 + $0x8] sm:$0xff]
    %v68 = vld [vmem:[#allocation6 + $0x10] sm:$0xff]
    %v69 = vld [vmem:[#allocation6 + $0x18] sm:$0xff]
    %v70 = vld [vmem:[#allocation6 + $0x20] sm:$0xff]
    %v71 = vld [vmem:[#allocation6 + $0x28] sm:$0xff]
    %v72 = vld [vmem:[#allocation6 + $0x30] sm:$0xff]
    %v73 = vld [vmem:[#allocation6 + $0x38] sm:$0xff]
    %v74 = vld [vmem:[#allocation6 + $0x40] sm:$0xff]
    %v75 = vld [vmem:[#allocation6 + $0x48] sm:$0xff]
    %v76 = vld [vmem:[#allocation6 + $0x50] sm:$0xff]
    %v77 = vld [vmem:[#allocation6 + $0x58] sm:$0xff]
    %v78 = vld [vmem:[#allocation6 + $0x60] sm:$0xff]
    %v79 = vld [vmem:[#allocation6 + $0x68] sm:$0xff]
    %v80 = vld [vmem:[#allocation6 + $0x70] sm:$0xff]
    %v81 = vld [vmem:[#allocation6 + $0x78] sm:$0xff]
    %v82 = vld [vmem:[%s2] sm:$0x1]
    %v84 = vlaneseq
    %v85 = vshrl.u32 %v84, 7
    %v86 = vsub.s32 0, %v85
    %v87 = vrot.slane %v82, %v86
    %89 = vmatprep.subr.mxu0 0.0
    %90 = vmatpush1.msra.mxu0 %v81
    %91 = vmatprep.subr.mxu0 0.0
    %92 = vmatpush1.msra.mxu0 %v80
    %93 = vmatprep.subr.mxu0 0.0
    %94 = vmatpush1.msra.mxu0 %v79
    %95 = vmatprep.subr.mxu0 0.0
    %96 = vmatpush1.msra.mxu0 %v78
    %97 = vmatprep.subr.mxu0 0.0
    %98 = vmatpush1.msra.mxu0 %v77
    %99 = vmatprep.subr.mxu0 0.0
    %100 = vmatpush1.msra.mxu0 %v76
    %101 = vmatprep.subr.mxu0 0.0
    %102 = vmatpush1.msra.mxu0 %v75
    %103 = vmatprep.subr.mxu0 0.0
    %104 = vmatpush1.msra.mxu0 %v74
    %105 = vmatprep.subr.mxu0 0.0
    %106 = vmatpush1.msra.mxu0 %v73
    %107 = vmatprep.subr.mxu0 0.0
    %108 = vmatpush1.msra.mxu0 %v72
    %109 = vmatprep.subr.mxu0 0.0
    %110 = vmatpush1.msra.mxu0 %v71
    %111 = vmatprep.subr.mxu0 0.0
    %112 = vmatpush1.msra.mxu0 %v70
    %113 = vmatprep.subr.mxu0 0.0
    %114 = vmatpush1.msra.mxu0 %v69
    %115 = vmatprep.subr.mxu0 0.0
    %116 = vmatpush1.msra.mxu0 %v68
    %117 = vmatprep.subr.mxu0 0.0
    %118 = vmatpush1.msra.mxu0 %v67
    %119 = vmatprep.subr.mxu0 0.0
    %120 = vmatpush1.msra.mxu0 %v66
    %121 = vmatprep.subr.mxu0 0.0
    %122 = vmatpush2.msra.mxu0 0.0
    %123 = vmatprep.subr.mxu0 0.0
    %124 = vmatpush2.msra.mxu0 0.0
    %125 = vmatprep.subr.mxu0 0.0
    %126 = vmatpush2.msra.mxu0 0.0
    %127 = vmatprep.subr.mxu0 0.0
    %128 = vmatpush2.msra.mxu0 0.0
    %129 = vmatprep.subr.mxu0 0.0
    %130 = vmatpush2.msra.mxu0 0.0
    %131 = vmatprep.subr.mxu0 0.0
    %132 = vmatpush2.msra.mxu0 0.0
    %133 = vmatprep.subr.mxu0 0.0
    %134 = vmatpush2.msra.mxu0 0.0
    %135 = vmatprep.subr.mxu0 0.0
    %136 = vmatpush2.msra.mxu0 0.0
    %137 = vmatprep.subr.mxu0 0.0
    %138 = vmatpush2.msra.mxu0 0.0
    %139 = vmatprep.subr.mxu0 0.0
    %140 = vmatpush2.msra.mxu0 0.0
    %141 = vmatprep.subr.mxu0 0.0
    %142 = vmatpush2.msra.mxu0 0.0
    %143 = vmatprep.subr.mxu0 0.0
    %144 = vmatpush2.msra.mxu0 0.0
    %145 = vmatprep.subr.mxu0 0.0
    %146 = vmatpush2.msra.mxu0 0.0
    %147 = vmatprep.subr.mxu0 0.0
    %148 = vmatpush2.msra.mxu0 0.0
    %149 = vmatprep.subr.mxu0 0.0
    %150 = vmatpush2.msra.mxu0 0.0
    %151 = vmatprep.subr.mxu0 0.0
    %152 = vmatpush2.msra.mxu0 0.0
    %153 = vmatprep.mubr.f32.mxu0 0.0
    %154 = vmatmul.mubr.f32.gmra.mxu0 %v65
    %v155 = vpop.f32.mrf.mxu0
    %v156 = vadd.f32 %v87, %v155
    %v157 = vpop.f32.mrf.mxu0
    %158 = vdwg.mxu0
    %v159 = vmax.f32 %v156, 0.0
    %v160 = vld [vmem:[#allocation2] sm:$0xff]
    %v161 = vld [vmem:[#allocation8] sm:$0xff]
    %v162 = vld [vmem:[#allocation8 + $0x8] sm:$0xff]
    %v163 = vld [vmem:[#allocation8 + $0x10] sm:$0xff]
    %v164 = vld [vmem:[#allocation8 + $0x18] sm:$0xff]
    %v165 = vld [vmem:[#allocation8 + $0x20] sm:$0xff]
    %v166 = vld [vmem:[#allocation8 + $0x28] sm:$0xff]
    %v167 = vld [vmem:[#allocation8 + $0x30] sm:$0xff]
    %v168 = vld [vmem:[#allocation8 + $0x38] sm:$0xff]
    %v169 = vld [vmem:[#allocation8 + $0x40] sm:$0xff]
    %v170 = vld [vmem:[#allocation8 + $0x48] sm:$0xff]
    %v171 = vld [vmem:[#allocation8 + $0x50] sm:$0xff]
    %v172 = vld [vmem:[#allocation8 + $0x58] sm:$0xff]
    %v173 = vld [vmem:[#allocation8 + $0x60] sm:$0xff]
    %v174 = vld [vmem:[#allocation8 + $0x68] sm:$0xff]
    %v175 = vld [vmem:[#allocation8 + $0x70] sm:$0xff]
    %v176 = vld [vmem:[#allocation8 + $0x78] sm:$0xff]
    %177 = vmatprep.subr.mxu0 0.0
    %178 = vmatpush1.msra.mxu0 %v176
    %179 = vmatprep.subr.mxu0 0.0
    %180 = vmatpush1.msra.mxu0 %v175
    %181 = vmatprep.subr.mxu0 0.0
    %182 = vmatpush1.msra.mxu0 %v174
    %183 = vmatprep.subr.mxu0 0.0
    %184 = vmatpush1.msra.mxu0 %v173
    %185 = vmatprep.subr.mxu0 0.0
    %186 = vmatpush1.msra.mxu0 %v172
    %187 = vmatprep.subr.mxu0 0.0
    %188 = vmatpush1.msra.mxu0 %v171
    %189 = vmatprep.subr.mxu0 0.0
    %190 = vmatpush1.msra.mxu0 %v170
    %191 = vmatprep.subr.mxu0 0.0
    %192 = vmatpush1.msra.mxu0 %v169
    %193 = vmatprep.subr.mxu0 0.0
    %194 = vmatpush1.msra.mxu0 %v168
    %195 = vmatprep.subr.mxu0 0.0
    %196 = vmatpush1.msra.mxu0 %v167
    %197 = vmatprep.subr.mxu0 0.0
    %198 = vmatpush1.msra.mxu0 %v166
    %199 = vmatprep.subr.mxu0 0.0
    %200 = vmatpush1.msra.mxu0 %v165
    %201 = vmatprep.subr.mxu0 0.0
    %202 = vmatpush1.msra.mxu0 %v164
    %203 = vmatprep.subr.mxu0 0.0
    %204 = vmatpush1.msra.mxu0 %v163
    %205 = vmatprep.subr.mxu0 0.0
    %206 = vmatpush1.msra.mxu0 %v162
    %207 = vmatprep.subr.mxu0 0.0
    %208 = vmatpush1.msra.mxu0 %v161
    %209 = vmatprep.subr.mxu0 0.0
    %210 = vmatpush2.msra.mxu0 0.0
    %211 = vmatprep.subr.mxu0 0.0
    %212 = vmatpush2.msra.mxu0 0.0
    %213 = vmatprep.subr.mxu0 0.0
    %214 = vmatpush2.msra.mxu0 0.0
    %215 = vmatprep.subr.mxu0 0.0
    %216 = vmatpush2.msra.mxu0 0.0
    %217 = vmatprep.subr.mxu0 0.0
    %218 = vmatpush2.msra.mxu0 0.0
    %219 = vmatprep.subr.mxu0 0.0
    %220 = vmatpush2.msra.mxu0 0.0
    %221 = vmatprep.subr.mxu0 0.0
    %222 = vmatpush2.msra.mxu0 0.0
    %223 = vmatprep.subr.mxu0 0.0
    %224 = vmatpush2.msra.mxu0 0.0
    %225 = vmatprep.subr.mxu0 0.0
    %226 = vmatpush2.msra.mxu0 0.0
    %227 = vmatprep.subr.mxu0 0.0
    %228 = vmatpush2.msra.mxu0 0.0
    %229 = vmatprep.subr.mxu0 0.0
    %230 = vmatpush2.msra.mxu0 0.0
    %231 = vmatprep.subr.mxu0 0.0
    %232 = vmatpush2.msra.mxu0 0.0
    %233 = vmatprep.subr.mxu0 0.0
    %234 = vmatpush2.msra.mxu0 0.0
    %235 = vmatprep.subr.mxu0 0.0
    %236 = vmatpush2.msra.mxu0 0.0
    %237 = vmatprep.subr.mxu0 0.0
    %238 = vmatpush2.msra.mxu0 0.0
    %239 = vmatprep.subr.mxu0 0.0
    %240 = vmatpush2.msra.mxu0 0.0
    %241 = vmatprep.mubr.f32.mxu0 0.0
    %242 = vmatmul.mubr.f32.gmra.mxu0 %v159
    %v243 = vpop.f32.mrf.mxu0
    %v244 = vadd.f32 0.0, %v243
    %v245 = vpop.f32.mrf.mxu0
    %246 = vdwg.mxu0
    %v247 = vadd.f32 %v160, %v244
    %248 = vst [vmem:[#allocation2] sm:$0xff] %v247
    // Predicated region
    $region38: #{tpu_custom_call.1} parent=1 // pred_check
      %p249 = pneg %p60
    $region39: #{tpu_custom_call.1} parent=1 // pred_check_branch
      %251 = sbr.rel (%p249) target = $region41
    $region40: #{tpu_custom_call.1} parent=1 // pred_region
      %v252 = vld [vmem:[#allocation2] sm:$0xff]
      %v253 = vld [vmem:[%s4] sm:$0x1]
      %v255 = vlaneseq
      %v256 = vshrl.u32 %v255, 7
      %v257 = vsub.s32 0, %v256
      %v258 = vrot.slane %v253, %v257
      %v260 = vadd.f32 %v252, %v258
      %261 = vst [vmem:[#allocation9] sm:$0xff] %v260
    $region41: #{tpu_custom_call.1} parent=1 // pred_fallthru
      _
    // Predicated region
    $region42: #{tpu_custom_call.1} parent=1 // pred_check
      _
    $region43: #{tpu_custom_call.1} parent=1 // pred_check_branch
      %263 = sbr.rel (0) target = $region45
    $region44: #{tpu_custom_call.1} parent=1 // pred_region
      %s265 = ssub.s32 128, 128
      %266 = vsyncadd [#allocation5], %s265
      %s268 = sshll.u32 [#allocation9], 4
      %s269 = int_to_ptr.vmem [resolvable:$true] %s268
      %271 = dma.vmem_to_hbm [thread:$0]  %s269, 128, %s5, [#allocation5]
    $region45: #{tpu_custom_call.1} parent=1 // pred_fallthru
      _
    // Predicated region
    $region46: #{tpu_custom_call.1} parent=1 // pred_check
      _
    $region47: #{tpu_custom_call.1} parent=1 // pred_check_branch
      %273 = sbr.rel (0) target = $region49
    $region48: #{tpu_custom_call.1} parent=1 // pred_region
      %274 = dma.done [#allocation5], 128
    $region49: #{tpu_custom_call.1} parent=1 // pred_fallthru
      _
    %275 = vsyncpa [#allocation4], 1
    %276 = vsyncpa [#allocation7], 1
    %277 = vsyncpa [#allocation5], 1

</llo_original>
